<compile_context>
chip_gen: v7x
topology: tpu7x:2x2x1
jax: 0.10.0
libtpu: 0.0.40
codegen_flags: <defaults>
</compile_context>

<pallas_src>
import functools

import jax
import jax.numpy as jnp
from jax import lax
from jax.experimental import pallas as pl
from jax.experimental.pallas import tpu as pltpu

ACT_NONE, ACT_RELU, ACT_TANH = 0, 1, 2
_ACT_FROM_NAME = {None: ACT_NONE, "ReLU": ACT_RELU, "Tanh": ACT_TANH}


def _round_up(x, m):
    return ((x + m - 1) // m) * m


# ----------------------------------------------------------------------------
# In-kernel fused-MLP helpers (entire MLP evaluated inside one kernel body)
# ----------------------------------------------------------------------------
def _ln_act(h, gamma, beta, layer_meta):
    use_ln, act = layer_meta
    if use_ln:
        # torch.nn.LayerNorm: biased variance, eps=1e-5, elementwise affine.
        mean = jnp.mean(h, axis=-1, keepdims=True)
        var = jnp.mean(jnp.square(h - mean), axis=-1, keepdims=True)
        h = (h - mean) * lax.rsqrt(var + 1e-5) * gamma + beta
    if act == ACT_RELU:
        h = jnp.maximum(h, 0.0)
    elif act == ACT_TANH:
        h = jnp.tanh(h)
    return h


def _mlp_compute(parts, param_refs, meta):
    """Run all layers of one MLP. `parts` are the K-split inputs of layer 0
    (equivalent to concatenating them along the feature axis)."""
    w0 = param_refs[0][...]
    b0 = param_refs[1][...]
    off = 0
    h = None
    for p in parts:
        d = p.shape[-1]
        contrib = jnp.dot(p, w0[off:off + d, :], preferred_element_type=jnp.float32)
        h = contrib if h is None else h + contrib
        off += d
    h = h + b0
    h = _ln_act(h, param_refs[2][...], param_refs[3][...], meta[0])
    for li in range(1, len(meta)):
        base = 4 * li
        h = jnp.dot(h, param_refs[base][...], preferred_element_type=jnp.float32)
        h = h + param_refs[base + 1][...]
        h = _ln_act(h, param_refs[base + 2][...], param_refs[base + 3][...], meta[li])
    return h


# ----------------------------------------------------------------------------
# Pallas kernels
# ----------------------------------------------------------------------------
def _rows_mlp_kernel(x_ref, *rest, meta, normalize):
    """Fused MLP over a tile of rows. Optionally fuses F.normalize on the output."""
    param_refs = rest[:-1]
    o_ref = rest[-1]
    h = _mlp_compute([x_ref[...]], param_refs, meta)
    if normalize:
        norm = jnp.sqrt(jnp.sum(h * h, axis=-1, keepdims=True))
        h = h / jnp.maximum(norm, 1e-12)
    o_ref[...] = h


def _node_update_kernel(idx_ref, nodes_ref, edges_ref, *rest, meta):
    """Fused scatter_add(edges -> receiver nodes) + node-network MLP + residual.

    Grid = (node_tiles, edge_tiles); the edge axis is the reduction axis (last, "arbitrary").
    Messages accumulate in a VMEM scratch; the MLP runs on the final reduction step only.
    """
    param_refs = rest[:-2]
    o_ref, msg_acc = rest[-2], rest[-1]

    k = pl.program_id(1)
    tn = nodes_ref.shape[0]
    te = edges_ref.shape[0]

    @pl.when(k == 0)
    def _():
        msg_acc[...] = jnp.zeros_like(msg_acc)

    idx = idx_ref[...]                                             # (1, te) receiver ids
    row0 = pl.program_id(0) * tn
    rows = row0 + lax.broadcasted_iota(jnp.int32, (tn, te), 0)
    onehot = (rows == idx).astype(jnp.float32)                     # (tn, te) block only
    msg_acc[...] += jnp.dot(onehot, edges_ref[...], preferred_element_type=jnp.float32)

    @pl.when(k == pl.num_programs(1) - 1)
    def _():
        nodes = nodes_ref[...]
        h = _mlp_compute([nodes, msg_acc[...]], param_refs, meta)  # cat([nodes, msgs]) via K-split
        o_ref[...] = h + nodes                                     # residual


def _edge_mlp_kernel(s_ref, r_ref, src_ref, *rest, meta, has_edges, residual):
    """Fused vectorized row gather (one-hot matmul against the VMEM-resident node table)
    + edge MLP (+ optional residual). No serial per-row copies."""
    if has_edges:
        edges_ref, rest = rest[0], rest[1:]
    param_refs = rest[:-1]
    o_ref = rest[-1]

    src = src_ref[...]                                             # (n_pad, d_src), VMEM-resident
    te = s_ref.shape[0]
    n_pad = src_ref.shape[0]
    col = lax.broadcasted_iota(jnp.int32, (te, n_pad), 1)
    gs = jnp.dot((s_ref[...] == col).astype(jnp.float32), src,     # gather senders (MXU)
                 preferred_element_type=jnp.float32)
    gr = jnp.dot((r_ref[...] == col).astype(jnp.float32), src,     # gather receivers (MXU)
                 preferred_element_type=jnp.float32)

    parts = [gs, gr]
    if has_edges:
        parts.append(edges_ref[...])
    h = _mlp_compute(parts, param_refs, meta)                      # cat([...]) via K-split
    if residual:
        h = h + edges_ref[...]
    o_ref[...] = h


# ----------------------------------------------------------------------------
# Wrappers
# ----------------------------------------------------------------------------
def _flatten_mlp(mlp):
    arrays, meta = [], []
    for layer in mlp:
        dout = layer["w"].shape[1]
        arrays += [layer["w"], layer["b"].reshape(1, dout),
                   layer["gamma"].reshape(1, dout), layer["beta"].reshape(1, dout)]
        meta.append((bool(layer["use_ln"]), int(layer["act"])))
    return arrays, tuple(meta)


def fused_rows_mlp(x, mlp, *, normalize=False, tile_rows=512):
    n, din = x.shape
    tile = min(tile_rows, _round_up(n, 8))
    n_pad = _round_up(n, tile)
    x_p = jnp.pad(x, ((0, n_pad - n), (0, 0))) if n_pad != n else x
    params, meta = _flatten_mlp(mlp)
    dout = mlp[-1]["w"].shape[1]

    in_specs = [pl.BlockSpec((tile, din), lambda i: (i, 0))]
    in_specs += [pl.BlockSpec(a.shape, lambda i: (0, 0)) for a in params]

    out = pl.pallas_call(
        functools.partial(_rows_mlp_kernel, meta=meta, normalize=normalize),
        grid=(n_pad // tile,),
        in_specs=in_specs,
        out_specs=pl.BlockSpec((tile, dout), lambda i: (i, 0)),
        out_shape=jax.ShapeDtypeStruct((n_pad, dout), jnp.float32),
        compiler_params=pltpu.CompilerParams(dimension_semantics=("parallel",)),
    )(x_p, *params)
    return out[:n]


def fused_node_update(nodes, edges, receivers, mlp, *, tile_n=512, tile_e=512):
    """new_nodes = MLP(cat([nodes, scatter_add(edges, receivers)])) + nodes, fully fused."""
    n, latent = nodes.shape
    e, dedge = edges.shape
    tn = min(tile_n, _round_up(n, 8))
    n_pad = _round_up(n, tn)
    te = min(tile_e, _round_up(e, 128))
    e_pad = _round_up(e, te)

    nodes_p = jnp.pad(nodes, ((0, n_pad - n), (0, 0))) if n_pad != n else nodes
    edges_p = jnp.pad(edges, ((0, e_pad - e), (0, 0))) if e_pad != e else edges
    ridx = jnp.pad(receivers.astype(jnp.int32), (0, e_pad - e), constant_values=n_pad)
    ridx = ridx.reshape(1, e_pad)                       # padded edges scatter nowhere

    params, meta = _flatten_mlp(mlp)
    dout = mlp[-1]["w"].shape[1]

    in_specs = [
        pl.BlockSpec((1, te), lambda i, k: (0, k)),          # receiver ids for this edge tile
        pl.BlockSpec((tn, latent), lambda i, k: (i, 0)),     # node tile
        pl.BlockSpec((te, dedge), lambda i, k: (k, 0)),      # edge tile
    ]
    in_specs += [pl.BlockSpec(a.shape, lambda i, k: (0, 0)) for a in params]

    out = pl.pallas_call(
        functools.partial(_node_update_kernel, meta=meta),
        grid=(n_pad // tn, e_pad // te),
        in_specs=in_specs,
        out_specs=pl.BlockSpec((tn, dout), lambda i, k: (i, 0)),
        out_shape=jax.ShapeDtypeStruct((n_pad, dout), jnp.float32),
        scratch_shapes=[pltpu.VMEM((tn, dedge), jnp.float32)],
        compiler_params=pltpu.CompilerParams(
            dimension_semantics=("parallel", "arbitrary")),
    )(ridx, nodes_p, edges_p, *params)
    return out[:n]


def fused_edge_mlp(src, senders, receivers, edges, mlp, *, residual, tile_e=512):
    """edges_out = MLP(cat([src[senders], src[receivers], (edges)])) (+ edges if residual)."""
    e = senders.shape[0]
    n, d_src = src.shape
    n_pad = _round_up(n, 8)
    src_p = jnp.pad(src, ((0, n_pad - n), (0, 0))) if n_pad != n else src

    te = min(tile_e, _round_up(e, 128))
    e_pad = _round_up(e, te)
    pad_e = e_pad - e

    s_p = jnp.pad(senders.astype(jnp.int32), (0, pad_e)).reshape(e_pad, 1)
    r_p = jnp.pad(receivers.astype(jnp.int32), (0, pad_e)).reshape(e_pad, 1)

    params, meta = _flatten_mlp(mlp)
    dout = mlp[-1]["w"].shape[1]
    has_edges = edges is not None

    operands = [s_p, r_p, src_p]
    in_specs = [
        pl.BlockSpec((te, 1), lambda i: (i, 0)),             # sender ids (column vector)
        pl.BlockSpec((te, 1), lambda i: (i, 0)),             # receiver ids (column vector)
        pl.BlockSpec((n_pad, d_src), lambda i: (0, 0)),      # VMEM-resident gather source
    ]
    if has_edges:
        edges_p = jnp.pad(edges, ((0, pad_e), (0, 0))) if pad_e else edges
        operands.append(edges_p)
        in_specs.append(pl.BlockSpec((te, edges.shape[1]), lambda i: (i, 0)))
    operands += params
    in_specs += [pl.BlockSpec(a.shape, lambda i: (0, 0)) for a in params]

    out = pl.pallas_call(
        functools.partial(_edge_mlp_kernel, meta=meta, has_edges=has_edges,
                          residual=residual),
        grid=(e_pad // te,),
        in_specs=in_specs,
        out_specs=pl.BlockSpec((te, dout), lambda i: (i, 0)),
        out_shape=jax.ShapeDtypeStruct((e_pad, dout), jnp.float32),
        compiler_params=pltpu.CompilerParams(dimension_semantics=("parallel",)),
    )(*operands)
    return out[:e]


# ----------------------------------------------------------------------------
# Parameter construction (mirrors make_mlp from the PyTorch code)
# ----------------------------------------------------------------------------
def _init_linear(key, din, dout):
    kw, kb = jax.random.split(key)
    bound = 1.0 / (din ** 0.5)
    w = jax.random.uniform(kw, (din, dout), jnp.float32, -bound, bound)
    b = jax.random.uniform(kb, (dout,), jnp.float32, -bound, bound)
    return w, b


def init_mlp(key, din, hidden, dout, nb_layers, *, layer_norm, hidden_act, output_act):
    sizes = [din] + [hidden] * (nb_layers - 1) + [dout]
    keys = jax.random.split(key, nb_layers)
    layers = []
    for i in range(nb_layers - 1):
        w, b = _init_linear(keys[i], sizes[i], sizes[i + 1])
        layers.append(dict(w=w, b=b, gamma=jnp.ones(sizes[i + 1], jnp.float32),
                           beta=jnp.zeros(sizes[i + 1], jnp.float32),
                           use_ln=layer_norm, act=hidden_act))
    w, b = _init_linear(keys[-1], sizes[-2], sizes[-1])
    if output_act == ACT_NONE:
        layers.append(dict(w=w, b=b, gamma=jnp.ones(sizes[-1], jnp.float32),
                           beta=jnp.zeros(sizes[-1], jnp.float32),
                           use_ln=False, act=ACT_NONE))
    else:
        layers.append(dict(w=w, b=b, gamma=jnp.ones(sizes[-1], jnp.float32),
                           beta=jnp.zeros(sizes[-1], jnp.float32),
                           use_ln=layer_norm, act=output_act))
    return layers


def init_interaction_gnn_block(key, hparams, iterations, emb=True):
    latent, hidden = hparams["latent"], hparams["hidden"]
    hid_act = _ACT_FROM_NAME[hparams["hidden_activation"]]
    hid_out_act = _ACT_FROM_NAME[hparams["hidden_output_activation"]]
    keys = jax.random.split(key, 5 + 2 * iterations)

    params = {
        "node_encoder": init_mlp(keys[0], hparams["spatial_channels"], hidden, latent,
                                 hparams["nb_node_layer"], layer_norm=hparams["layernorm"],
                                 hidden_act=hid_act, output_act=hid_act),
        "edge_encoder": init_mlp(keys[1], 2 * hparams["spatial_channels"], hidden, latent,
                                 hparams["nb_edge_layer"], layer_norm=hparams["layernorm"],
                                 hidden_act=hid_act, output_act=hid_act),
    }

    def make_cell(knode, kedge):
        node_net = init_mlp(knode, 2 * latent, hidden, latent, hparams["nb_node_layer"],
                            layer_norm=hparams["layernorm"], hidden_act=hid_act,
                            output_act=hid_act)
        edge_net = init_mlp(kedge, 3 * latent, hidden, latent, hparams["nb_edge_layer"],
                            layer_norm=hparams["layernorm"], hidden_act=hid_act,
                            output_act=ACT_TANH)
        return node_net, edge_net

    if hparams["share_weight"]:
        cell = make_cell(keys[3], keys[4])
        params["cells"] = [cell for _ in range(iterations)]
    else:
        params["cells"] = [make_cell(keys[5 + 2 * i], keys[6 + 2 * i])
                           for i in range(iterations)]

    params["emb"] = emb
    if emb:
        params["output_layer"] = init_mlp(keys[2], latent, hidden, hparams["emb_dim"],
                                          hparams["output_layers"],
                                          layer_norm=hparams["layernorm"],
                                          hidden_act=hid_out_act, output_act=ACT_NONE)
    return params


# ----------------------------------------------------------------------------
# Forward pass (InteractionGNNBlock.forward)
# ----------------------------------------------------------------------------
def interaction_gnn_block_forward(params, x, graph):
    # NOTE: torch.utils.checkpoint only affects backward-pass memory; forward semantics unchanged.
    senders = graph[0].astype(jnp.int32)
    receivers = graph[1].astype(jnp.int32)

    nodes = fused_rows_mlp(x, params["node_encoder"])
    edges = fused_edge_mlp(x, senders, receivers, None, params["edge_encoder"],
                           residual=False)

    for node_net, edge_net in params["cells"]:
        # scatter_add + cat + node MLP + residual, fused
        nodes = fused_node_update(nodes, edges, receivers, node_net)
        # gather(senders) + gather(receivers) + cat + edge MLP (Tanh out) + residual, fused
        edges = fused_edge_mlp(nodes, senders, receivers, edges, edge_net, residual=True)

    if params["emb"]:
        embeddings = fused_rows_mlp(nodes, params["output_layer"], normalize=True)
        return embeddings, nodes, edges
    return nodes, edges


# ----------------------------------------------------------------------------
# Pure-JAX reference (for a loose sanity check only)
# ----------------------------------------------------------------------------
def _mlp_ref(h, mlp):
    for layer in mlp:
        h = h @ layer["w"] + layer["b"]
        if layer["use_ln"]:
            mean = jnp.mean(h, -1, keepdims=True)
            var = jnp.mean(jnp.square(h - mean), -1, keepdims=True)
            h = (h - mean) * lax.rsqrt(var + 1e-5) * layer["gamma"] + layer["beta"]
        if layer["act"] == ACT_RELU:
            h = jnp.maximum(h, 0.0)
        elif layer["act"] == ACT_TANH:
            h = jnp.tanh(h)
    return h


def _forward_ref(params, x, graph):
    s, r = graph[0].astype(jnp.int32), graph[1].astype(jnp.int32)
    nodes = _mlp_ref(x, params["node_encoder"])
    edges = _mlp_ref(jnp.concatenate([x[s], x[r]], -1), params["edge_encoder"])
    for node_net, edge_net in params["cells"]:
        msgs = jnp.zeros_like(nodes).at[r].add(edges)
        nodes = _mlp_ref(jnp.concatenate([nodes, msgs], -1), node_net) + nodes
        edges = _mlp_ref(jnp.concatenate([nodes[s], nodes[r], edges], -1), edge_net) + edges
    emb = _mlp_ref(nodes, params["output_layer"])
    emb = emb / jnp.maximum(jnp.sqrt(jnp.sum(emb * emb, -1, keepdims=True)), 1e-12)
    return emb, nodes, edges


# ----------------------------------------------------------------------------
# Demo
# ----------------------------------------------------------------------------
if __name__ == "__main__":
    hparams = dict(
        spatial_channels=8,
        hidden=32,
        latent=16,
        emb_dim=8,
        nb_node_layer=2,
        nb_edge_layer=2,
        output_layers=2,
        hidden_activation="ReLU",
        hidden_output_activation="ReLU",
        layernorm=True,
        share_weight=False,
    )
    iterations = 2
    num_nodes, num_edges = 64, 256

    key = jax.random.PRNGKey(0)
    k_param, k_x, k_graph = jax.random.split(key, 3)

    params = init_interaction_gnn_block(k_param, hparams, iterations, emb=True)
    x = jax.random.normal(k_x, (num_nodes, hparams["spatial_channels"]), jnp.float32)
    graph = jax.random.randint(k_graph, (2, num_edges), 0, num_nodes, jnp.int32)

    embeddings, nodes, edges = interaction_gnn_block_forward(params, x, graph)
    jax.block_until_ready((embeddings, nodes, edges))

    assert embeddings.shape == (num_nodes, hparams["emb_dim"])
    assert nodes.shape == (num_nodes, hparams["latent"])
    assert edges.shape == (num_edges, hparams["latent"])
    assert bool(jnp.all(jnp.isfinite(embeddings)))

    # Loose structural sanity check against a pure-JAX reference (generous tolerance to
    # absorb matmul-precision differences between the XLA reference and the MXU kernels).
    emb_r, nodes_r, edges_r = _forward_ref(params, x, graph)
    for got, ref in ((embeddings, emb_r), (nodes, nodes_r), (edges, edges_r)):
        scale = 1.0 + float(jnp.max(jnp.abs(ref)))
        assert float(jnp.max(jnp.abs(got - ref))) < 5e-2 * scale

    print("KERNEL_OK")
</pallas_src>

<mosaic_0001>
module attributes {stable_mosaic.version = 11 : i64} {
  func.func @_rows_mlp_kernel(%arg0: i32, %arg1: memref<64x8xf32, #tpu.memory_space<vmem>>, %arg2: memref<8x32xf32, #tpu.memory_space<vmem>>, %arg3: memref<1x32xf32, #tpu.memory_space<vmem>>, %arg4: memref<1x32xf32, #tpu.memory_space<vmem>>, %arg5: memref<1x32xf32, #tpu.memory_space<vmem>>, %arg6: memref<32x16xf32, #tpu.memory_space<vmem>>, %arg7: memref<1x16xf32, #tpu.memory_space<vmem>>, %arg8: memref<1x16xf32, #tpu.memory_space<vmem>>, %arg9: memref<1x16xf32, #tpu.memory_space<vmem>>, %arg10: memref<64x16xf32, #tpu.memory_space<vmem>>) attributes {dimension_semantics = [#tpu.dimension_semantics<parallel>], iteration_bounds = array<i64: 1>, scalar_prefetch = 0 : i64, scratch_operands = 0 : i64, tpu.core_type = #tpu.core_type<tc>, window_params = [{transform_indices = @transform_0, window_bounds = array<i64: 64, 8>}, {pipeline_mode = #tpu.pipeline_mode<synchronous>, transform_indices = @transform_1, window_bounds = array<i64: 8, 32>}, {pipeline_mode = #tpu.pipeline_mode<synchronous>, transform_indices = @transform_2, window_bounds = array<i64: 1, 32>}, {pipeline_mode = #tpu.pipeline_mode<synchronous>, transform_indices = @transform_3, window_bounds = array<i64: 1, 32>}, {pipeline_mode = #tpu.pipeline_mode<synchronous>, transform_indices = @transform_4, window_bounds = array<i64: 1, 32>}, {pipeline_mode = #tpu.pipeline_mode<synchronous>, transform_indices = @transform_5, window_bounds = array<i64: 32, 16>}, {pipeline_mode = #tpu.pipeline_mode<synchronous>, transform_indices = @transform_6, window_bounds = array<i64: 1, 16>}, {pipeline_mode = #tpu.pipeline_mode<synchronous>, transform_indices = @transform_7, window_bounds = array<i64: 1, 16>}, {pipeline_mode = #tpu.pipeline_mode<synchronous>, transform_indices = @transform_8, window_bounds = array<i64: 1, 16>}, {transform_indices = @transform_9, window_bounds = array<i64: 64, 16>}]} {
    %c0 = arith.constant 0 : index
    %c0_0 = arith.constant 0 : index
    %0 = vector.load %arg1[%c0, %c0_0] : memref<64x8xf32, #tpu.memory_space<vmem>>, vector<64x8xf32>
    %c0_1 = arith.constant 0 : index
    %c0_2 = arith.constant 0 : index
    %1 = vector.load %arg2[%c0_1, %c0_2] : memref<8x32xf32, #tpu.memory_space<vmem>>, vector<8x32xf32>
    %c0_3 = arith.constant 0 : index
    %c0_4 = arith.constant 0 : index
    %2 = vector.load %arg3[%c0_3, %c0_4] : memref<1x32xf32, #tpu.memory_space<vmem>>, vector<1x32xf32>
    %cst = arith.constant dense<0.000000e+00> : vector<64x32xf32>
    %3 = tpu.matmul %0, %1, %cst {dimension_numbers = #tpu.dot_dimension_numbers<[1], [0], [0], [1], [0, 0, 1, 1], [], []>} : vector<64x8xf32>, vector<8x32xf32>, vector<64x32xf32> -> vector<64x32xf32>
    %4 = vector.broadcast %2 : vector<1x32xf32> to vector<64x32xf32>
    %5 = arith.addf %3, %4 : vector<64x32xf32>
    %c0_5 = arith.constant 0 : index
    %c0_6 = arith.constant 0 : index
    %6 = vector.load %arg4[%c0_5, %c0_6] : memref<1x32xf32, #tpu.memory_space<vmem>>, vector<1x32xf32>
    %c0_7 = arith.constant 0 : index
    %c0_8 = arith.constant 0 : index
    %7 = vector.load %arg5[%c0_7, %c0_8] : memref<1x32xf32, #tpu.memory_space<vmem>>, vector<1x32xf32>
    %cst_9 = arith.constant dense<0.000000e+00> : vector<64xf32>
    %8 = vector.multi_reduction <add>, %5, %cst_9 [1] : vector<64x32xf32> to vector<64xf32>
    %9 = vector.shape_cast %8 : vector<64xf32> to vector<64x1xf32>
    %cst_10 = arith.constant 3.200000e+01 : f32
    %10 = vector.broadcast %cst_10 : f32 to vector<64x1xf32>
    %11 = arith.divf %9, %10 : vector<64x1xf32>
    %12 = vector.broadcast %11 : vector<64x1xf32> to vector<64x32xf32>
    %13 = arith.subf %5, %12 : vector<64x32xf32>
    %14 = arith.mulf %13, %13 : vector<64x32xf32>
    %cst_11 = arith.constant dense<0.000000e+00> : vector<64xf32>
    %15 = vector.multi_reduction <add>, %14, %cst_11 [1] : vector<64x32xf32> to vector<64xf32>
    %16 = vector.shape_cast %15 : vector<64xf32> to vector<64x1xf32>
    %cst_12 = arith.constant 3.200000e+01 : f32
    %17 = vector.broadcast %cst_12 : f32 to vector<64x1xf32>
    %18 = arith.divf %16, %17 : vector<64x1xf32>
    %19 = vector.broadcast %11 : vector<64x1xf32> to vector<64x32xf32>
    %20 = arith.subf %5, %19 : vector<64x32xf32>
    %cst_13 = arith.constant 9.99999974E-6 : f32
    %21 = vector.broadcast %cst_13 : f32 to vector<64x1xf32>
    %22 = arith.addf %18, %21 : vector<64x1xf32>
    %23 = math.rsqrt %22 : vector<64x1xf32>
    %24 = vector.broadcast %23 : vector<64x1xf32> to vector<64x32xf32>
    %25 = arith.mulf %20, %24 : vector<64x32xf32>
    %26 = vector.broadcast %6 : vector<1x32xf32> to vector<64x32xf32>
    %27 = arith.mulf %25, %26 : vector<64x32xf32>
    %28 = vector.broadcast %7 : vector<1x32xf32> to vector<64x32xf32>
    %29 = arith.addf %27, %28 : vector<64x32xf32>
    %cst_14 = arith.constant 0.000000e+00 : f32
    %30 = vector.broadcast %cst_14 : f32 to vector<64x32xf32>
    %31 = arith.maximumf %29, %30 : vector<64x32xf32>
    %c0_15 = arith.constant 0 : index
    %c0_16 = arith.constant 0 : index
    %32 = vector.load %arg6[%c0_15, %c0_16] : memref<32x16xf32, #tpu.memory_space<vmem>>, vector<32x16xf32>
    %cst_17 = arith.constant dense<0.000000e+00> : vector<64x16xf32>
    %33 = tpu.matmul %31, %32, %cst_17 {dimension_numbers = #tpu.dot_dimension_numbers<[1], [0], [0], [1], [0, 0, 1, 1], [], []>} : vector<64x32xf32>, vector<32x16xf32>, vector<64x16xf32> -> vector<64x16xf32>
    %c0_18 = arith.constant 0 : index
    %c0_19 = arith.constant 0 : index
    %34 = vector.load %arg7[%c0_18, %c0_19] : memref<1x16xf32, #tpu.memory_space<vmem>>, vector<1x16xf32>
    %35 = vector.broadcast %34 : vector<1x16xf32> to vector<64x16xf32>
    %36 = arith.addf %33, %35 : vector<64x16xf32>
    %c0_20 = arith.constant 0 : index
    %c0_21 = arith.constant 0 : index
    %37 = vector.load %arg8[%c0_20, %c0_21] : memref<1x16xf32, #tpu.memory_space<vmem>>, vector<1x16xf32>
    %c0_22 = arith.constant 0 : index
    %c0_23 = arith.constant 0 : index
    %38 = vector.load %arg9[%c0_22, %c0_23] : memref<1x16xf32, #tpu.memory_space<vmem>>, vector<1x16xf32>
    %cst_24 = arith.constant dense<0.000000e+00> : vector<64xf32>
    %39 = vector.multi_reduction <add>, %36, %cst_24 [1] : vector<64x16xf32> to vector<64xf32>
    %40 = vector.shape_cast %39 : vector<64xf32> to vector<64x1xf32>
    %cst_25 = arith.constant 1.600000e+01 : f32
    %41 = vector.broadcast %cst_25 : f32 to vector<64x1xf32>
    %42 = arith.divf %40, %41 : vector<64x1xf32>
    %43 = vector.broadcast %42 : vector<64x1xf32> to vector<64x16xf32>
    %44 = arith.subf %36, %43 : vector<64x16xf32>
    %45 = arith.mulf %44, %44 : vector<64x16xf32>
    %cst_26 = arith.constant dense<0.000000e+00> : vector<64xf32>
    %46 = vector.multi_reduction <add>, %45, %cst_26 [1] : vector<64x16xf32> to vector<64xf32>
    %47 = vector.shape_cast %46 : vector<64xf32> to vector<64x1xf32>
    %cst_27 = arith.constant 1.600000e+01 : f32
    %48 = vector.broadcast %cst_27 : f32 to vector<64x1xf32>
    %49 = arith.divf %47, %48 : vector<64x1xf32>
    %50 = vector.broadcast %42 : vector<64x1xf32> to vector<64x16xf32>
    %51 = arith.subf %36, %50 : vector<64x16xf32>
    %cst_28 = arith.constant 9.99999974E-6 : f32
    %52 = vector.broadcast %cst_28 : f32 to vector<64x1xf32>
    %53 = arith.addf %49, %52 : vector<64x1xf32>
    %54 = math.rsqrt %53 : vector<64x1xf32>
    %55 = vector.broadcast %54 : vector<64x1xf32> to vector<64x16xf32>
    %56 = arith.mulf %51, %55 : vector<64x16xf32>
    %57 = vector.broadcast %37 : vector<1x16xf32> to vector<64x16xf32>
    %58 = arith.mulf %56, %57 : vector<64x16xf32>
    %59 = vector.broadcast %38 : vector<1x16xf32> to vector<64x16xf32>
    %60 = arith.addf %58, %59 : vector<64x16xf32>
    %cst_29 = arith.constant 0.000000e+00 : f32
    %61 = vector.broadcast %cst_29 : f32 to vector<64x16xf32>
    %62 = arith.maximumf %60, %61 : vector<64x16xf32>
    %c0_30 = arith.constant 0 : index
    %c0_31 = arith.constant 0 : index
    %63 = vector.load %arg10[%c0_30, %c0_31] : memref<64x16xf32, #tpu.memory_space<vmem>>, vector<64x16xf32>
    tpu.vector_store %arg10[%c0_30, %c0_31], %62 {strides = array<i32>} : memref<64x16xf32, #tpu.memory_space<vmem>>, vector<64x16xf32>,
    return
  }
  func.func @transform_0(%arg0: i32) -> (i32, i32) {
    %c0_i32 = arith.constant 0 : i32
    %c0_i32_0 = arith.constant 0 : i32
    return %arg0, %c0_i32 : i32, i32
  }
  func.func @transform_1(%arg0: i32) -> (i32, i32) {
    %c0_i32 = arith.constant 0 : i32
    %c0_i32_0 = arith.constant 0 : i32
    %c0_i32_1 = arith.constant 0 : i32
    return %c0_i32, %c0_i32_0 : i32, i32
  }
  func.func @transform_2(%arg0: i32) -> (i32, i32) {
    %c0_i32 = arith.constant 0 : i32
    %c0_i32_0 = arith.constant 0 : i32
    %c0_i32_1 = arith.constant 0 : i32
    return %c0_i32, %c0_i32_0 : i32, i32
  }
  func.func @transform_3(%arg0: i32) -> (i32, i32) {
    %c0_i32 = arith.constant 0 : i32
    %c0_i32_0 = arith.constant 0 : i32
    %c0_i32_1 = arith.constant 0 : i32
    return %c0_i32, %c0_i32_0 : i32, i32
  }
  func.func @transform_4(%arg0: i32) -> (i32, i32) {
    %c0_i32 = arith.constant 0 : i32
    %c0_i32_0 = arith.constant 0 : i32
    %c0_i32_1 = arith.constant 0 : i32
    return %c0_i32, %c0_i32_0 : i32, i32
  }
  func.func @transform_5(%arg0: i32) -> (i32, i32) {
    %c0_i32 = arith.constant 0 : i32
    %c0_i32_0 = arith.constant 0 : i32
    %c0_i32_1 = arith.constant 0 : i32
    return %c0_i32, %c0_i32_0 : i32, i32
  }
  func.func @transform_6(%arg0: i32) -> (i32, i32) {
    %c0_i32 = arith.constant 0 : i32
    %c0_i32_0 = arith.constant 0 : i32
    %c0_i32_1 = arith.constant 0 : i32
    return %c0_i32, %c0_i32_0 : i32, i32
  }
  func.func @transform_7(%arg0: i32) -> (i32, i32) {
    %c0_i32 = arith.constant 0 : i32
    %c0_i32_0 = arith.constant 0 : i32
    %c0_i32_1 = arith.constant 0 : i32
    return %c0_i32, %c0_i32_0 : i32, i32
  }
  func.func @transform_8(%arg0: i32) -> (i32, i32) {
    %c0_i32 = arith.constant 0 : i32
    %c0_i32_0 = arith.constant 0 : i32
    %c0_i32_1 = arith.constant 0 : i32
    return %c0_i32, %c0_i32_0 : i32, i32
  }
  func.func @transform_9(%arg0: i32) -> (i32, i32) {
    %c0_i32 = arith.constant 0 : i32
    %c0_i32_0 = arith.constant 0 : i32
    return %arg0, %c0_i32 : i32, i32
  }
}

</mosaic_0001>

<llo_original>
// kernel: tpu_custom_call.1
$region0: #{tpu_custom_call.1}
  #allocation0 [shape = 'u32[]', space=smem, size = 0x4, offset = 0x4, fixed_abs, tag = 'smem constant byte address 0x4 - core index']
  #allocation1 [shape = 'u32[144,128]{1,0:T(1,128)}', space=vmem, size = 0x12000, scoped, tag = 'internal scratch']
  %s0 = inlined_call_operand.vmem [shape: f32[64,8], index: 0, kind: input, shape index: {}]
  %s1 = inlined_call_operand.vmem [shape: f32[8,32], index: 1, kind: input, shape index: {}]
  %s2 = inlined_call_operand.vmem [shape: f32[1,32], index: 2, kind: input, shape index: {}]
  %s3 = inlined_call_operand.vmem [shape: f32[1,32], index: 3, kind: input, shape index: {}]
  %s4 = inlined_call_operand.vmem [shape: f32[1,32], index: 4, kind: input, shape index: {}]
  %s5 = inlined_call_operand.vmem [shape: f32[32,16], index: 5, kind: input, shape index: {}]
  %s6 = inlined_call_operand.vmem [shape: f32[1,16], index: 6, kind: input, shape index: {}]
  %s7 = inlined_call_operand.vmem [shape: f32[1,16], index: 7, kind: input, shape index: {}]
  %s8 = inlined_call_operand.vmem [shape: f32[1,16], index: 8, kind: input, shape index: {}]
  %s9 = inlined_call_operand.vmem [shape: f32[64,16], index: 9, kind: output, shape index: {}]
  %s10 = sld [smem:[#allocation0]]
  $region46: #{tpu_custom_call.1} parent=0
    _
  %s12 = ssub.s32 1, %s10
  %s13 = scalar_select 0, %s12, %s10
  // Predicated region
  $region2: #{tpu_custom_call.1} parent=0 // pred_check
    _
  $region3: #{tpu_custom_call.1} parent=0 // pred_check_branch
    %15 = sbr.rel (0) target = $region5
  $region4: #{tpu_custom_call.1} parent=0 // pred_region
    _
  $region5: #{tpu_custom_call.1} parent=0 // pred_fallthru
    _
  // Predicated region
  $region6: #{tpu_custom_call.1} parent=0 // pred_check
    _
  $region7: #{tpu_custom_call.1} parent=0 // pred_check_branch
    %17 = sbr.rel (0) target = $region9
  $region8: #{tpu_custom_call.1} parent=0 // pred_region
    _
  $region9: #{tpu_custom_call.1} parent=0 // pred_fallthru
    _
  // Predicated region
  $region10: #{tpu_custom_call.1} parent=0 // pred_check
    _
  $region11: #{tpu_custom_call.1} parent=0 // pred_check_branch
    %19 = sbr.rel (0) target = $region13
  $region12: #{tpu_custom_call.1} parent=0 // pred_region
    _
  $region13: #{tpu_custom_call.1} parent=0 // pred_fallthru
    _
  // Predicated region
  $region14: #{tpu_custom_call.1} parent=0 // pred_check
    _
  $region15: #{tpu_custom_call.1} parent=0 // pred_check_branch
    %21 = sbr.rel (0) target = $region17
  $region16: #{tpu_custom_call.1} parent=0 // pred_region
    _
  $region17: #{tpu_custom_call.1} parent=0 // pred_fallthru
    _
  // Predicated region
  $region18: #{tpu_custom_call.1} parent=0 // pred_check
    _
  $region19: #{tpu_custom_call.1} parent=0 // pred_check_branch
    %23 = sbr.rel (0) target = $region21
  $region20: #{tpu_custom_call.1} parent=0 // pred_region
    _
  $region21: #{tpu_custom_call.1} parent=0 // pred_fallthru
    _
  // Predicated region
  $region22: #{tpu_custom_call.1} parent=0 // pred_check
    _
  $region23: #{tpu_custom_call.1} parent=0 // pred_check_branch
    %25 = sbr.rel (0) target = $region25
  $region24: #{tpu_custom_call.1} parent=0 // pred_region
    _
  $region25: #{tpu_custom_call.1} parent=0 // pred_fallthru
    _
  // Predicated region
  $region26: #{tpu_custom_call.1} parent=0 // pred_check
    _
  $region27: #{tpu_custom_call.1} parent=0 // pred_check_branch
    %27 = sbr.rel (0) target = $region29
  $region28: #{tpu_custom_call.1} parent=0 // pred_region
    _
  $region29: #{tpu_custom_call.1} parent=0 // pred_fallthru
    _
  // Predicated region
  $region30: #{tpu_custom_call.1} parent=0 // pred_check
    _
  $region31: #{tpu_custom_call.1} parent=0 // pred_check_branch
    %29 = sbr.rel (0) target = $region33
  $region32: #{tpu_custom_call.1} parent=0 // pred_region
    _
  $region33: #{tpu_custom_call.1} parent=0 // pred_fallthru
    _
  // Predicated region
  $region34: #{tpu_custom_call.1} parent=0 // pred_check
    _
  $region35: #{tpu_custom_call.1} parent=0 // pred_check_branch
    %31 = sbr.rel (0) target = $region37
  $region36: #{tpu_custom_call.1} parent=0 // pred_region
    _
  $region37: #{tpu_custom_call.1} parent=0 // pred_fallthru
    _
  %v32 = vld [vmem:[%s0] sm:$0xff]
  %v33 = vld [vmem:[%s0 + $0x8] sm:$0xff]
  %v34 = vld [vmem:[%s0 + $0x10] sm:$0xff]
  %v35 = vld [vmem:[%s0 + $0x18] sm:$0xff]
  %v36 = vld [vmem:[%s0 + $0x20] sm:$0xff]
  %v37 = vld [vmem:[%s0 + $0x28] sm:$0xff]
  %v38 = vld [vmem:[%s0 + $0x30] sm:$0xff]
  %v39 = vld [vmem:[%s0 + $0x38] sm:$0xff]
  %v40 = vld [vmem:[%s1] sm:$0xff]
  %v41 = vld [vmem:[%s2] sm:$0x1]
  %v43 = vlaneseq
  %v44 = vshrl.u32 %v43, 7
  %v45 = vsub.s32 0, %v44
  %v46 = vrot.slane %v41, %v45
  %vm48 = vcmask 64512
  %v50 = vsel %vm48, %v32, 0
  %v53 = vsel %vm48, %v33, 0
  %v56 = vsel %vm48, %v34, 0
  %v59 = vsel %vm48, %v35, 0
  %v62 = vsel %vm48, %v36, 0
  %v65 = vsel %vm48, %v37, 0
  %v68 = vsel %vm48, %v38, 0
  %v71 = vsel %vm48, %v39, 0
  %73 = vmatprep.subr.mxu0 0.0
  %74 = vmatpush1.msra.mxu0 %v40
  %75 = vmatprep.subr.mxu0 0.0
  %76 = vmatpush1.msra.mxu0 0.0
  %77 = vmatprep.subr.mxu0 0.0
  %78 = vmatpush1.msra.mxu0 0.0
  %79 = vmatprep.subr.mxu0 0.0
  %80 = vmatpush1.msra.mxu0 0.0
  %81 = vmatprep.subr.mxu0 0.0
  %82 = vmatpush1.msra.mxu0 0.0
  %83 = vmatprep.subr.mxu0 0.0
  %84 = vmatpush1.msra.mxu0 0.0
  %85 = vmatprep.subr.mxu0 0.0
  %86 = vmatpush1.msra.mxu0 0.0
  %87 = vmatprep.subr.mxu0 0.0
  %88 = vmatpush1.msra.mxu0 0.0
  %89 = vmatprep.subr.mxu0 0.0
  %90 = vmatpush1.msra.mxu0 0.0
  %91 = vmatprep.subr.mxu0 0.0
  %92 = vmatpush1.msra.mxu0 0.0
  %93 = vmatprep.subr.mxu0 0.0
  %94 = vmatpush1.msra.mxu0 0.0
  %95 = vmatprep.subr.mxu0 0.0
  %96 = vmatpush1.msra.mxu0 0.0
  %97 = vmatprep.subr.mxu0 0.0
  %98 = vmatpush1.msra.mxu0 0.0
  %99 = vmatprep.subr.mxu0 0.0
  %100 = vmatpush1.msra.mxu0 0.0
  %101 = vmatprep.subr.mxu0 0.0
  %102 = vmatpush1.msra.mxu0 0.0
  %103 = vmatprep.subr.mxu0 0.0
  %104 = vmatpush1.msra.mxu0 0.0
  %105 = vmatprep.subr.mxu0 0.0
  %106 = vmatpush1.msra.mxu0 0.0
  %107 = vmatprep.subr.mxu0 0.0
  %108 = vmatpush1.msra.mxu0 0.0
  %109 = vmatprep.subr.mxu0 0.0
  %110 = vmatpush1.msra.mxu0 0.0
  %111 = vmatprep.subr.mxu0 0.0
  %112 = vmatpush1.msra.mxu0 0.0
  %113 = vmatprep.subr.mxu0 0.0
  %114 = vmatpush1.msra.mxu0 0.0
  %115 = vmatprep.subr.mxu0 0.0
  %116 = vmatpush1.msra.mxu0 0.0
  %117 = vmatprep.subr.mxu0 0.0
  %118 = vmatpush1.msra.mxu0 0.0
  %119 = vmatprep.subr.mxu0 0.0
  %120 = vmatpush1.msra.mxu0 0.0
  %121 = vmatprep.subr.mxu0 0.0
  %122 = vmatpush1.msra.mxu0 0.0
  %123 = vmatprep.subr.mxu0 0.0
  %124 = vmatpush1.msra.mxu0 0.0
  %125 = vmatprep.subr.mxu0 0.0
  %126 = vmatpush1.msra.mxu0 0.0
  %127 = vmatprep.subr.mxu0 0.0
  %128 = vmatpush1.msra.mxu0 0.0
  %129 = vmatprep.subr.mxu0 0.0
  %130 = vmatpush1.msra.mxu0 0.0
  %131 = vmatprep.subr.mxu0 0.0
  %132 = vmatpush1.msra.mxu0 0.0
  %133 = vmatprep.subr.mxu0 0.0
  %134 = vmatpush1.msra.mxu0 0.0
  %135 = vmatprep.subr.mxu0 0.0
  %136 = vmatpush1.msra.mxu0 0.0
  %137 = vmatprep.mubr.f32.mxu0 0.0
  %138 = vmatmul.mubr.f32.gmra.mrb[0].mxu0 %v50
  %v139 = vpop.f32.mrb[0].mxu0
  %v140 = vadd.f32 %v46, %v139
  %v141 = vpop.f32.mrb[0].mxu0
  %142 = vmatprep.mubr.f32.mxu0 0.0
  %143 = vmatmul.mubr.f32.gmra.mrb[0].mxu0 %v53
  %v144 = vpop.f32.mrb[0].mxu0
  %v145 = vadd.f32 %v46, %v144
  %v146 = vpop.f32.mrb[0].mxu0
  %147 = vmatprep.mubr.f32.mxu0 0.0
  %148 = vmatmul.mubr.f32.gmra.mrb[0].mxu0 %v56
  %v149 = vpop.f32.mrb[0].mxu0
  %v150 = vadd.f32 %v46, %v149
  %v151 = vpop.f32.mrb[0].mxu0
  %152 = vmatprep.mubr.f32.mxu0 0.0
  %153 = vmatmul.mubr.f32.gmra.mrb[0].mxu0 %v59
  %v154 = vpop.f32.mrb[0].mxu0
  %v155 = vadd.f32 %v46, %v154
  %v156 = vpop.f32.mrb[0].mxu0
  %157 = vmatprep.mubr.f32.mxu0 0.0
  %158 = vmatmul.mubr.f32.gmra.mrb[0].mxu0 %v62
  %v159 = vpop.f32.mrb[0].mxu0
  %v160 = vadd.f32 %v46, %v159
  %v161 = vpop.f32.mrb[0].mxu0
  %162 = vmatprep.mubr.f32.mxu0 0.0
  %163 = vmatmul.mubr.f32.gmra.mrb[0].mxu0 %v65
  %v164 = vpop.f32.mrb[0].mxu0
  %v165 = vadd.f32 %v46, %v164
  %v166 = vpop.f32.mrb[0].mxu0
  %167 = vmatprep.mubr.f32.mxu0 0.0
  %168 = vmatmul.mubr.f32.gmra.mrb[0].mxu0 %v68
  %v169 = vpop.f32.mrb[0].mxu0
  %v170 = vadd.f32 %v46, %v169
  %v171 = vpop.f32.mrb[0].mxu0
  %172 = vmatprep.mubr.f32.mxu0 0.0
  %173 = vmatmul.mubr.f32.gmra.mrb[0].mxu0 %v71
  %v174 = vpop.f32.mrb[0].mxu0
  %v175 = vadd.f32 %v46, %v174
  %v176 = vpop.f32.mrb[0].mxu0
  %177 = vdwg.mxu0
  %v178 = vld [vmem:[%s3] sm:$0x1]
  %v179 = vld [vmem:[%s4] sm:$0x1]
  %vm180 = vcmask 261120
  %v181 = vsel %vm180, %v140, 0.0
  %182 = vadd.xlane.f32.xlu0 %v181
  %v183 = vpop.xlane.xlu0 %182
  %v184 = vsel %vm180, %v145, 0.0
  %185 = vadd.xlane.f32.xlu0 %v184
  %v186 = vpop.xlane.xlu0 %185
  %v187 = vsel %vm180, %v150, 0.0
  %188 = vadd.xlane.f32.xlu0 %v187
  %v189 = vpop.xlane.xlu0 %188
  %v190 = vsel %vm180, %v155, 0.0
  %191 = vadd.xlane.f32.xlu0 %v190
  %v192 = vpop.xlane.xlu0 %191
  %v193 = vsel %vm180, %v160, 0.0
  %194 = vadd.xlane.f32.xlu0 %v193
  %v195 = vpop.xlane.xlu0 %194
  %v196 = vsel %vm180, %v165, 0.0
  %197 = vadd.xlane.f32.xlu0 %v196
  %v198 = vpop.xlane.xlu0 %197
  %v199 = vsel %vm180, %v170, 0.0
  %200 = vadd.xlane.f32.xlu0 %v199
  %v201 = vpop.xlane.xlu0 %200
  %v202 = vsel %vm180, %v175, 0.0
  %203 = vadd.xlane.f32.xlu0 %v202
  %v204 = vpop.xlane.xlu0 %203
  %v205 = vrcp.pop 32.0
  %v206 = vmul.f32 %v183, %v205
  %v207 = vmul.f32 %v186, %v205
  %v208 = vmul.f32 %v189, %v205
  %v209 = vmul.f32 %v192, %v205
  %v210 = vmul.f32 %v195, %v205
  %v211 = vmul.f32 %v198, %v205
  %v212 = vmul.f32 %v201, %v205
  %v213 = vmul.f32 %v204, %v205
  %v214 = vsub.f32 %v140, %v206
  %v215 = vsub.f32 %v145, %v207
  %v216 = vsub.f32 %v150, %v208
  %v217 = vsub.f32 %v155, %v209
  %v218 = vsub.f32 %v160, %v210
  %v219 = vsub.f32 %v165, %v211
  %v220 = vsub.f32 %v170, %v212
  %v221 = vsub.f32 %v175, %v213
  %v222 = vmul.f32 %v214, %v214
  %v223 = vmul.f32 %v215, %v215
  %v224 = vmul.f32 %v216, %v216
  %v225 = vmul.f32 %v217, %v217
  %v226 = vmul.f32 %v218, %v218
  %v227 = vmul.f32 %v219, %v219
  %v228 = vmul.f32 %v220, %v220
  %v229 = vmul.f32 %v221, %v221
  %v230 = vsel %vm180, %v222, 0.0
  %231 = vadd.xlane.f32.xlu0 %v230
  %v232 = vpop.xlane.xlu0 %231
  %v233 = vsel %vm180, %v223, 0.0
  %234 = vadd.xlane.f32.xlu0 %v233
  %v235 = vpop.xlane.xlu0 %234
  %v236 = vsel %vm180, %v224, 0.0
  %237 = vadd.xlane.f32.xlu0 %v236
  %v238 = vpop.xlane.xlu0 %237
  %v239 = vsel %vm180, %v225, 0.0
  %240 = vadd.xlane.f32.xlu0 %v239
  %v241 = vpop.xlane.xlu0 %240
  %v242 = vsel %vm180, %v226, 0.0
  %243 = vadd.xlane.f32.xlu0 %v242
  %v244 = vpop.xlane.xlu0 %243
  %v245 = vsel %vm180, %v227, 0.0
  %246 = vadd.xlane.f32.xlu0 %v245
  %v247 = vpop.xlane.xlu0 %246
  %v248 = vsel %vm180, %v228, 0.0
  %249 = vadd.xlane.f32.xlu0 %v248
  %v250 = vpop.xlane.xlu0 %249
  %v251 = vsel %vm180, %v229, 0.0
  %252 = vadd.xlane.f32.xlu0 %v251
  %v253 = vpop.xlane.xlu0 %252
  %v254 = vmul.f32 %v232, %v205
  %v255 = vmul.f32 %v235, %v205
  %v256 = vmul.f32 %v238, %v205
  %v257 = vmul.f32 %v241, %v205
  %v258 = vmul.f32 %v244, %v205
  %v259 = vmul.f32 %v247, %v205
  %v260 = vmul.f32 %v250, %v205
  %v261 = vmul.f32 %v253, %v205
  %v262 = vadd.f32 %v254, 1e-05
  %v263 = vadd.f32 %v255, 1e-05
  %v264 = vadd.f32 %v256, 1e-05
  %v265 = vadd.f32 %v257, 1e-05
  %v266 = vadd.f32 %v258, 1e-05
  %v267 = vadd.f32 %v259, 1e-05
  %v268 = vadd.f32 %v260, 1e-05
  %v269 = vadd.f32 %v261, 1e-05
  %v270 = vrsqrt.pop %v262
  %v271 = vrsqrt.pop %v263
  %v272 = vrsqrt.pop %v264
  %v273 = vrsqrt.pop %v265
  %v274 = vrsqrt.pop %v266
  %v275 = vrsqrt.pop %v267
  %v276 = vrsqrt.pop %v268
  %v277 = vrsqrt.pop %v269
  %v278 = vmul.f32 %v214, %v270
  %v279 = vmul.f32 %v215, %v271
  %v280 = vmul.f32 %v216, %v272
  %v281 = vmul.f32 %v217, %v273
  %v282 = vmul.f32 %v218, %v274
  %v283 = vmul.f32 %v219, %v275
  %v284 = vmul.f32 %v220, %v276
  %v285 = vmul.f32 %v221, %v277
  %v287 = vlaneseq
  %v288 = vshrl.u32 %v287, 7
  %v289 = vsub.s32 0, %v288
  %v290 = vrot.slane %v178, %v289
  %v292 = vmul.f32 %v278, %v290
  %v293 = vmul.f32 %v279, %v290
  %v294 = vmul.f32 %v280, %v290
  %v295 = vmul.f32 %v281, %v290
  %v296 = vmul.f32 %v282, %v290
  %v297 = vmul.f32 %v283, %v290
  %v298 = vmul.f32 %v284, %v290
  %v299 = vmul.f32 %v285, %v290
  %v301 = vlaneseq
  %v302 = vshrl.u32 %v301, 7
  %v303 = vsub.s32 0, %v302
  %v304 = vrot.slane %v179, %v303
  %v306 = vadd.f32 %v292, %v304
  %v307 = vadd.f32 %v293, %v304
  %v308 = vadd.f32 %v294, %v304
  %v309 = vadd.f32 %v295, %v304
  %v310 = vadd.f32 %v296, %v304
  %v311 = vadd.f32 %v297, %v304
  %v312 = vadd.f32 %v298, %v304
  %v313 = vadd.f32 %v299, %v304
  %v314 = vmax.f32 %v306, 0.0
  %v315 = vmax.f32 %v307, 0.0
  %v316 = vmax.f32 %v308, 0.0
  %v317 = vmax.f32 %v309, 0.0
  %v318 = vmax.f32 %v310, 0.0
  %v319 = vmax.f32 %v311, 0.0
  %v320 = vmax.f32 %v312, 0.0
  %v321 = vmax.f32 %v313, 0.0
  %v322 = vld [vmem:[%s5] sm:$0xff]
  %v323 = vld [vmem:[%s5 + $0x8] sm:$0xff]
  %v324 = vld [vmem:[%s5 + $0x10] sm:$0xff]
  %v325 = vld [vmem:[%s5 + $0x18] sm:$0xff]
  %v326 = vld [vmem:[%s6] sm:$0x1]
  %v328 = vlaneseq
  %v329 = vshrl.u32 %v328, 7
  %v330 = vsub.s32 0, %v329
  %v331 = vrot.slane %v326, %v330
  %v334 = vsel %vm180, %v314, 0
  %v337 = vsel %vm180, %v315, 0
  %v340 = vsel %vm180, %v316, 0
  %v343 = vsel %vm180, %v317, 0
  %v346 = vsel %vm180, %v318, 0
  %v349 = vsel %vm180, %v319, 0
  %v352 = vsel %vm180, %v320, 0
  %v355 = vsel %vm180, %v321, 0
  %357 = vmatprep.subr.mxu0 0.0
  %358 = vmatpush1.msra.mxu0 %v322
  %359 = vmatprep.subr.mxu0 0.0
  %360 = vmatpush1.msra.mxu0 %v323
  %361 = vmatprep.subr.mxu0 0.0
  %362 = vmatpush1.msra.mxu0 %v324
  %363 = vmatprep.subr.mxu0 0.0
  %364 = vmatpush1.msra.mxu0 %v325
  %365 = vmatprep.subr.mxu0 0.0
  %366 = vmatpush1.msra.mxu0 0.0
  %367 = vmatprep.subr.mxu0 0.0
  %368 = vmatpush1.msra.mxu0 0.0
  %369 = vmatprep.subr.mxu0 0.0
  %370 = vmatpush1.msra.mxu0 0.0
  %371 = vmatprep.subr.mxu0 0.0
  %372 = vmatpush1.msra.mxu0 0.0
  %373 = vmatprep.subr.mxu0 0.0
  %374 = vmatpush1.msra.mxu0 0.0
  %375 = vmatprep.subr.mxu0 0.0
  %376 = vmatpush1.msra.mxu0 0.0
  %377 = vmatprep.subr.mxu0 0.0
  %378 = vmatpush1.msra.mxu0 0.0
  %379 = vmatprep.subr.mxu0 0.0
  %380 = vmatpush1.msra.mxu0 0.0
  %381 = vmatprep.subr.mxu0 0.0
  %382 = vmatpush1.msra.mxu0 0.0
  %383 = vmatprep.subr.mxu0 0.0
  %384 = vmatpush1.msra.mxu0 0.0
  %385 = vmatprep.subr.mxu0 0.0
  %386 = vmatpush1.msra.mxu0 0.0
  %387 = vmatprep.subr.mxu0 0.0
  %388 = vmatpush1.msra.mxu0 0.0
  %389 = vmatprep.subr.mxu0 0.0
  %390 = vmatpush1.msra.mxu0 0.0
  %391 = vmatprep.subr.mxu0 0.0
  %392 = vmatpush1.msra.mxu0 0.0
  %393 = vmatprep.subr.mxu0 0.0
  %394 = vmatpush1.msra.mxu0 0.0
  %395 = vmatprep.subr.mxu0 0.0
  %396 = vmatpush1.msra.mxu0 0.0
  %397 = vmatprep.subr.mxu0 0.0
  %398 = vmatpush1.msra.mxu0 0.0
  %399 = vmatprep.subr.mxu0 0.0
  %400 = vmatpush1.msra.mxu0 0.0
  %401 = vmatprep.subr.mxu0 0.0
  %402 = vmatpush1.msra.mxu0 0.0
  %403 = vmatprep.subr.mxu0 0.0
  %404 = vmatpush1.msra.mxu0 0.0
  %405 = vmatprep.subr.mxu0 0.0
  %406 = vmatpush1.msra.mxu0 0.0
  %407 = vmatprep.subr.mxu0 0.0
  %408 = vmatpush1.msra.mxu0 0.0
  %409 = vmatprep.subr.mxu0 0.0
  %410 = vmatpush1.msra.mxu0 0.0
  %411 = vmatprep.subr.mxu0 0.0
  %412 = vmatpush1.msra.mxu0 0.0
  %413 = vmatprep.subr.mxu0 0.0
  %414 = vmatpush1.msra.mxu0 0.0
  %415 = vmatprep.subr.mxu0 0.0
  %416 = vmatpush1.msra.mxu0 0.0
  %417 = vmatprep.subr.mxu0 0.0
  %418 = vmatpush1.msra.mxu0 0.0
  %419 = vmatprep.subr.mxu0 0.0
  %420 = vmatpush1.msra.mxu0 0.0
  %421 = vmatprep.mubr.f32.mxu0 0.0
  %422 = vmatmul.mubr.f32.gmra.mrb[0].mxu0 %v334
  %v423 = vpop.f32.mrb[0].mxu0
  %v424 = vadd.f32 %v331, %v423
  %v425 = vpop.f32.mrb[0].mxu0
  %426 = vmatprep.mubr.f32.mxu0 0.0
  %427 = vmatmul.mubr.f32.gmra.mrb[0].mxu0 %v337
  %v428 = vpop.f32.mrb[0].mxu0
  %v429 = vadd.f32 %v331, %v428
  %v430 = vpop.f32.mrb[0].mxu0
  %431 = vmatprep.mubr.f32.mxu0 0.0
  %432 = vmatmul.mubr.f32.gmra.mrb[0].mxu0 %v340
  %v433 = vpop.f32.mrb[0].mxu0
  %v434 = vadd.f32 %v331, %v433
  %v435 = vpop.f32.mrb[0].mxu0
  %436 = vmatprep.mubr.f32.mxu0 0.0
  %437 = vmatmul.mubr.f32.gmra.mrb[0].mxu0 %v343
  %v438 = vpop.f32.mrb[0].mxu0
  %v439 = vadd.f32 %v331, %v438
  %v440 = vpop.f32.mrb[0].mxu0
  %441 = vmatprep.mubr.f32.mxu0 0.0
  %442 = vmatmul.mubr.f32.gmra.mrb[0].mxu0 %v346
  %v443 = vpop.f32.mrb[0].mxu0
  %v444 = vadd.f32 %v331, %v443
  %v445 = vpop.f32.mrb[0].mxu0
  %446 = vmatprep.mubr.f32.mxu0 0.0
  %447 = vmatmul.mubr.f32.gmra.mrb[0].mxu0 %v349
  %v448 = vpop.f32.mrb[0].mxu0
  %v449 = vadd.f32 %v331, %v448
  %v450 = vpop.f32.mrb[0].mxu0
  %451 = vmatprep.mubr.f32.mxu0 0.0
  %452 = vmatmul.mubr.f32.gmra.mrb[0].mxu0 %v352
  %v453 = vpop.f32.mrb[0].mxu0
  %v454 = vadd.f32 %v331, %v453
  %v455 = vpop.f32.mrb[0].mxu0
  %456 = vmatprep.mubr.f32.mxu0 0.0
  %457 = vmatmul.mubr.f32.gmra.mrb[0].mxu0 %v355
  %v458 = vpop.f32.mrb[0].mxu0
  %v459 = vadd.f32 %v331, %v458
  %v460 = vpop.f32.mrb[0].mxu0
  %461 = vdwg.mxu0
  %v462 = vld [vmem:[%s7] sm:$0x1]
  %v463 = vld [vmem:[%s8] sm:$0x1]
  %vm464 = vcmask 130048
  %v465 = vsel %vm464, %v424, 0.0
  %466 = vadd.xlane.f32.xlu0 %v465
  %v467 = vpop.xlane.xlu0 %466
  %v468 = vsel %vm464, %v429, 0.0
  %469 = vadd.xlane.f32.xlu0 %v468
  %v470 = vpop.xlane.xlu0 %469
  %v471 = vsel %vm464, %v434, 0.0
  %472 = vadd.xlane.f32.xlu0 %v471
  %v473 = vpop.xlane.xlu0 %472
  %v474 = vsel %vm464, %v439, 0.0
  %475 = vadd.xlane.f32.xlu0 %v474
  %v476 = vpop.xlane.xlu0 %475
  %v477 = vsel %vm464, %v444, 0.0
  %478 = vadd.xlane.f32.xlu0 %v477
  %v479 = vpop.xlane.xlu0 %478
  %v480 = vsel %vm464, %v449, 0.0
  %481 = vadd.xlane.f32.xlu0 %v480
  %v482 = vpop.xlane.xlu0 %481
  %v483 = vsel %vm464, %v454, 0.0
  %484 = vadd.xlane.f32.xlu0 %v483
  %v485 = vpop.xlane.xlu0 %484
  %v486 = vsel %vm464, %v459, 0.0
  %487 = vadd.xlane.f32.xlu0 %v486
  %v488 = vpop.xlane.xlu0 %487
  %v489 = vrcp.pop 16.0
  %v490 = vmul.f32 %v467, %v489
  %v491 = vmul.f32 %v470, %v489
  %v492 = vmul.f32 %v473, %v489
  %v493 = vmul.f32 %v476, %v489
  %v494 = vmul.f32 %v479, %v489
  %v495 = vmul.f32 %v482, %v489
  %v496 = vmul.f32 %v485, %v489
  %v497 = vmul.f32 %v488, %v489
  %v498 = vsub.f32 %v424, %v490
  %v499 = vsub.f32 %v429, %v491
  %v500 = vsub.f32 %v434, %v492
  %v501 = vsub.f32 %v439, %v493
  %v502 = vsub.f32 %v444, %v494
  %v503 = vsub.f32 %v449, %v495
  %v504 = vsub.f32 %v454, %v496
  %v505 = vsub.f32 %v459, %v497
  %v506 = vmul.f32 %v498, %v498
  %v507 = vmul.f32 %v499, %v499
  %v508 = vmul.f32 %v500, %v500
  %v509 = vmul.f32 %v501, %v501
  %v510 = vmul.f32 %v502, %v502
  %v511 = vmul.f32 %v503, %v503
  %v512 = vmul.f32 %v504, %v504
  %v513 = vmul.f32 %v505, %v505
  %v514 = vsel %vm464, %v506, 0.0
  %515 = vadd.xlane.f32.xlu0 %v514
  %v516 = vpop.xlane.xlu0 %515
  %v517 = vsel %vm464, %v507, 0.0
  %518 = vadd.xlane.f32.xlu0 %v517
  %v519 = vpop.xlane.xlu0 %518
  %v520 = vsel %vm464, %v508, 0.0
  %521 = vadd.xlane.f32.xlu0 %v520
  %v522 = vpop.xlane.xlu0 %521
  %v523 = vsel %vm464, %v509, 0.0
  %524 = vadd.xlane.f32.xlu0 %v523
  %v525 = vpop.xlane.xlu0 %524
  %v526 = vsel %vm464, %v510, 0.0
  %527 = vadd.xlane.f32.xlu0 %v526
  %v528 = vpop.xlane.xlu0 %527
  %v529 = vsel %vm464, %v511, 0.0
  %530 = vadd.xlane.f32.xlu0 %v529
  %v531 = vpop.xlane.xlu0 %530
  %v532 = vsel %vm464, %v512, 0.0
  %533 = vadd.xlane.f32.xlu0 %v532
  %v534 = vpop.xlane.xlu0 %533
  %v535 = vsel %vm464, %v513, 0.0
  %536 = vadd.xlane.f32.xlu0 %v535
  %v537 = vpop.xlane.xlu0 %536
  %v538 = vmul.f32 %v516, %v489
  %v539 = vmul.f32 %v519, %v489
  %v540 = vmul.f32 %v522, %v489
  %v541 = vmul.f32 %v525, %v489
  %v542 = vmul.f32 %v528, %v489
  %v543 = vmul.f32 %v531, %v489
  %v544 = vmul.f32 %v534, %v489
  %v545 = vmul.f32 %v537, %v489
  %v546 = vadd.f32 %v538, 1e-05
  %v547 = vadd.f32 %v539, 1e-05
  %v548 = vadd.f32 %v540, 1e-05
  %v549 = vadd.f32 %v541, 1e-05
  %v550 = vadd.f32 %v542, 1e-05
  %v551 = vadd.f32 %v543, 1e-05
  %v552 = vadd.f32 %v544, 1e-05
  %v553 = vadd.f32 %v545, 1e-05
  %v554 = vrsqrt.pop %v546
  %v555 = vrsqrt.pop %v547
  %v556 = vrsqrt.pop %v548
  %v557 = vrsqrt.pop %v549
  %v558 = vrsqrt.pop %v550
  %v559 = vrsqrt.pop %v551
  %v560 = vrsqrt.pop %v552
  %v561 = vrsqrt.pop %v553
  %v562 = vmul.f32 %v498, %v554
  %v563 = vmul.f32 %v499, %v555
  %v564 = vmul.f32 %v500, %v556
  %v565 = vmul.f32 %v501, %v557
  %v566 = vmul.f32 %v502, %v558
  %v567 = vmul.f32 %v503, %v559
  %v568 = vmul.f32 %v504, %v560
  %v569 = vmul.f32 %v505, %v561
  %v571 = vlaneseq
  %v572 = vshrl.u32 %v571, 7
  %v573 = vsub.s32 0, %v572
  %v574 = vrot.slane %v462, %v573
  %v576 = vmul.f32 %v562, %v574
  %v577 = vmul.f32 %v563, %v574
  %v578 = vmul.f32 %v564, %v574
  %v579 = vmul.f32 %v565, %v574
  %v580 = vmul.f32 %v566, %v574
  %v581 = vmul.f32 %v567, %v574
  %v582 = vmul.f32 %v568, %v574
  %v583 = vmul.f32 %v569, %v574
  %v585 = vlaneseq
  %v586 = vshrl.u32 %v585, 7
  %v587 = vsub.s32 0, %v586
  %v588 = vrot.slane %v463, %v587
  %v590 = vadd.f32 %v576, %v588
  %v591 = vadd.f32 %v577, %v588
  %v592 = vadd.f32 %v578, %v588
  %v593 = vadd.f32 %v579, %v588
  %v594 = vadd.f32 %v580, %v588
  %v595 = vadd.f32 %v581, %v588
  %v596 = vadd.f32 %v582, %v588
  %v597 = vadd.f32 %v583, %v588
  %v598 = vmax.f32 %v590, 0.0
  %v599 = vmax.f32 %v591, 0.0
  %v600 = vmax.f32 %v592, 0.0
  %v601 = vmax.f32 %v593, 0.0
  %v602 = vmax.f32 %v594, 0.0
  %v603 = vmax.f32 %v595, 0.0
  %v604 = vmax.f32 %v596, 0.0
  %v605 = vmax.f32 %v597, 0.0
  %606 = vst.msk [vmem:[%s9] sm:$0xff] %vm464, %v598
  %607 = vst.msk [vmem:[%s9 + $0x8] sm:$0xff] %vm464, %v599
  %608 = vst.msk [vmem:[%s9 + $0x10] sm:$0xff] %vm464, %v600
  %609 = vst.msk [vmem:[%s9 + $0x18] sm:$0xff] %vm464, %v601
  %610 = vst.msk [vmem:[%s9 + $0x20] sm:$0xff] %vm464, %v602
  %611 = vst.msk [vmem:[%s9 + $0x28] sm:$0xff] %vm464, %v603
  %612 = vst.msk [vmem:[%s9 + $0x30] sm:$0xff] %vm464, %v604
  %613 = vst.msk [vmem:[%s9 + $0x38] sm:$0xff] %vm464, %v605
  // Predicated region
  $region38: #{tpu_custom_call.1} parent=0 // pred_check
    _
  $region39: #{tpu_custom_call.1} parent=0 // pred_check_branch
    %615 = sbr.rel (0) target = $region41
  $region40: #{tpu_custom_call.1} parent=0 // pred_region
    _
  $region41: #{tpu_custom_call.1} parent=0 // pred_fallthru
    _
  // Predicated region
  $region42: #{tpu_custom_call.1} parent=0 // pred_check
    _
  $region43: #{tpu_custom_call.1} parent=0 // pred_check_branch
    %617 = sbr.rel (0) target = $region45
  $region44: #{tpu_custom_call.1} parent=0 // pred_region
    _
  $region45: #{tpu_custom_call.1} parent=0 // pred_fallthru
    _

</llo_original>
